<compile_context>
chip_gen: v7x
topology: tpu7x:2x2x1
jax: 0.10.0
libtpu: 0.0.40
codegen_flags: <defaults>
</compile_context>

<pallas_src>
import functools

import jax
import jax.numpy as jnp
from jax.experimental import pallas as pl
from jax.experimental.pallas import tpu as pltpu


def _round_up(x, m):
    return ((x + m - 1) // m) * m


def net_kernel(x_ref, w1_ref, b1_ref, w2_ref, b2_ref, o_ref):
    # fc1: cast activations to bf16 right before the MXU dot (f32 HBM read,
    # cast is cheap VPU work hidden under the DMA), accumulate in f32.
    x = x_ref[...].astype(jnp.bfloat16)                          # (tile_b, feat_p)
    h = jnp.dot(x, w1_ref[...], preferred_element_type=jnp.float32) + b1_ref[...]
    h = jnp.maximum(h, 0.0)

    # fc2: bf16 operands, f32 accumulation + bias. Padded output columns carry
    # a -1e30 bias (padded w2 columns are zero), so no per-tile mask is needed;
    # exp(-1e30 - m) underflows to 0 in the softmax sum.
    logits = jnp.dot(h.astype(jnp.bfloat16), w2_ref[...],
                     preferred_element_type=jnp.float32) + b2_ref[...]

    # Numerically stable log_softmax over dim=1 (max/sum on XLU, exp/log on EUP).
    m = jnp.max(logits, axis=-1, keepdims=True)
    shifted = logits - m
    lse = jnp.log(jnp.sum(jnp.exp(shifted), axis=-1, keepdims=True))

    # Lane-dense (tile_b, num_p) f32 store; real columns are sliced in the wrapper.
    o_ref[...] = shifted - lse


def prepare_params(w1, b1, w2, b2):
    """One-time weight preparation (hoisted out of the per-call path).

    w1: (iSize*iSize, Neuron)  [transposed vs. PyTorch (Neuron, iSize*iSize)]
    b1: (Neuron,)
    w2: (Neuron, num)          [transposed vs. PyTorch (num, Neuron)]
    b2: (num,)

    Returns lane-aligned bf16 weights / f32 biases. Padded b2 entries are set
    to -1e30 so padded softmax columns vanish without an in-kernel mask.
    """
    feat, Neuron = w1.shape
    num = w2.shape[1]
    feat_p = _round_up(feat, 128)
    nh_p = _round_up(Neuron, 128)
    num_p = _round_up(num, 128)

    w1_p = jnp.zeros((feat_p, nh_p), jnp.bfloat16).at[:feat, :Neuron].set(
        w1.astype(jnp.bfloat16))
    b1_p = jnp.zeros((1, nh_p), jnp.float32).at[0, :Neuron].set(
        b1.astype(jnp.float32))
    w2_p = jnp.zeros((nh_p, num_p), jnp.bfloat16).at[:Neuron, :num].set(
        w2.astype(jnp.bfloat16))
    b2_p = jnp.full((1, num_p), -1e30, jnp.float32).at[0, :num].set(
        b2.astype(jnp.float32))
    return w1_p, b1_p, w2_p, b2_p


def _choose_tile_b(B):
    # f32 activations -> multiples of 8 suffice. Cap at 1024 rows (working set
    # incl. double buffers is a few MiB, far under scoped VMEM on every
    # generation incl. v7x). For larger batches keep the grid at >= 2 steps so
    # both v7x TensorCores get work ("parallel" grid axis).
    if B <= 256:
        return _round_up(B, 8)
    tile = _round_up(-(-B // 2), 8)        # aim for >= 2 grid steps
    return max(256, min(1024, tile))


def _net_forward_impl(x, w1_p, b1_p, w2_p, b2_p, *, iSize, num):
    feat = iSize * iSize
    x2d = x.reshape(-1, feat)              # mimics x.view(-1, iSize*iSize)
    if x2d.dtype != jnp.float32:
        x2d = x2d.astype(jnp.float32)
    B = x2d.shape[0]

    feat_p, nh_p = w1_p.shape
    num_p = w2_p.shape[1]

    tile_b = _choose_tile_b(B)
    B_pad = _round_up(B, tile_b)

    # Only materialize a padded activation copy when it is actually required
    # (lane-aligned feature dim and tile-divisible batch -> pass x straight in;
    # avoids an extra read+write HBM pass over the activations).
    if B_pad != B or feat_p != feat:
        x_in = jnp.zeros((B_pad, feat_p), jnp.float32).at[:B, :feat].set(x2d)
    else:
        x_in = x2d

    grid = (B_pad // tile_b,)

    cost = pl.CostEstimate(
        flops=2 * B_pad * (feat_p * nh_p + nh_p * num_p),
        transcendentals=B_pad * (num_p + 1),
        bytes_accessed=(x_in.size * 4 + w1_p.size * 2 + w2_p.size * 2
                        + b1_p.size * 4 + b2_p.size * 4 + B_pad * num_p * 4),
    )

    out = pl.pallas_call(
        net_kernel,
        out_shape=jax.ShapeDtypeStruct((B_pad, num_p), jnp.float32),
        grid=grid,
        in_specs=[
            # Activations stream per batch tile (double-buffered by Pallas).
            pl.BlockSpec((tile_b, feat_p), lambda i: (i, 0)),
            # Weights/biases: constant block index -> fetched once, then
            # VMEM-resident across grid steps (no re-DMA on unchanged blocks).
            pl.BlockSpec((feat_p, nh_p), lambda i: (0, 0)),
            pl.BlockSpec((1, nh_p), lambda i: (0, 0)),
            pl.BlockSpec((nh_p, num_p), lambda i: (0, 0)),
            pl.BlockSpec((1, num_p), lambda i: (0, 0)),
        ],
        out_specs=pl.BlockSpec((tile_b, num_p), lambda i: (i, 0)),
        compiler_params=pltpu.CompilerParams(
            dimension_semantics=("parallel",),
        ),
        cost_estimate=cost,
    )(x_in, w1_p, b1_p, w2_p, b2_p)

    # Strip batch and lane padding (output stays f32 to match PyTorch forward).
    return out[:B, :num]


net_forward = jax.jit(_net_forward_impl, static_argnames=("iSize", "num"))


if __name__ == "__main__":
    # Module hyperparameters (small, consistent with the forward pass)
    num = 10        # output classes
    iSize = 16      # input is iSize x iSize -> 256 features
    Neuron = 32     # hidden width
    batch = 8

    key = jax.random.PRNGKey(0)
    kx, k1, k2, k3, k4 = jax.random.split(key, 5)

    # PyTorch Linear weights built directly in (in, out) layout for the kernel.
    x = jax.random.normal(kx, (batch, 1, iSize, iSize), dtype=jnp.float32)
    w1 = jax.random.normal(k1, (iSize * iSize, Neuron), dtype=jnp.float32) * 0.05
    b1 = jax.random.normal(k2, (Neuron,), dtype=jnp.float32) * 0.05
    w2 = jax.random.normal(k3, (Neuron, num), dtype=jnp.float32) * 0.05
    b2 = jax.random.normal(k4, (num,), dtype=jnp.float32) * 0.05

    # Weight pad/cast done once, outside the per-call path.
    params = prepare_params(w1, b1, w2, b2)
    params = jax.block_until_ready(params)

    out = net_forward(x, *params, iSize=iSize, num=num)
    out = jax.block_until_ready(out)

    # Sanity checks: shape and log_softmax rows sum to 1 in prob space.
    assert out.shape == (batch, num)
    row_sums = jnp.exp(out).sum(axis=1)
    assert jnp.allclose(row_sums, jnp.ones_like(row_sums), atol=1e-4)

    # Cross-check against a pure-JAX reference using the same bf16 matmul
    # operands / f32 accumulation as the kernel.
    x2d = x.reshape(-1, iSize * iSize)
    h_ref = jnp.maximum(
        jnp.dot(x2d.astype(jnp.bfloat16), w1.astype(jnp.bfloat16),
                preferred_element_type=jnp.float32) + b1, 0.0)
    logits_ref = jnp.dot(h_ref.astype(jnp.bfloat16), w2.astype(jnp.bfloat16),
                         preferred_element_type=jnp.float32) + b2
    ref_bf16 = jax.nn.log_softmax(logits_ref, axis=1)
    assert jnp.allclose(out, ref_bf16, atol=2e-3, rtol=2e-3)

    # Looser check against the full-f32 reference (bf16 operand rounding is a
    # deliberate precision trade vs. PyTorch's f32 forward).
    ref_f32 = jax.nn.log_softmax(
        jnp.maximum(x2d @ w1 + b1, 0.0) @ w2 + b2, axis=1)
    assert jnp.allclose(out, ref_f32, atol=5e-2)

    print("KERNEL_OK")
</pallas_src>

<mosaic_0001>
module attributes {stable_mosaic.version = 11 : i64} {
  func.func @net_kernel(%arg0: i32, %arg1: memref<8x256xf32, #tpu.memory_space<vmem>>, %arg2: memref<256x128xbf16, #tpu.memory_space<vmem>>, %arg3: memref<1x128xf32, #tpu.memory_space<vmem>>, %arg4: memref<128x128xbf16, #tpu.memory_space<vmem>>, %arg5: memref<1x128xf32, #tpu.memory_space<vmem>>, %arg6: memref<8x128xf32, #tpu.memory_space<vmem>>) attributes {dimension_semantics = [#tpu.dimension_semantics<parallel>], iteration_bounds = array<i64: 1>, scalar_prefetch = 0 : i64, scratch_operands = 0 : i64, tpu.core_type = #tpu.core_type<tc>, window_params = [{transform_indices = @transform_0, window_bounds = array<i64: 8, 256>}, {pipeline_mode = #tpu.pipeline_mode<synchronous>, transform_indices = @transform_1, window_bounds = array<i64: 256, 128>}, {pipeline_mode = #tpu.pipeline_mode<synchronous>, transform_indices = @transform_2, window_bounds = array<i64: 1, 128>}, {pipeline_mode = #tpu.pipeline_mode<synchronous>, transform_indices = @transform_3, window_bounds = array<i64: 128, 128>}, {pipeline_mode = #tpu.pipeline_mode<synchronous>, transform_indices = @transform_4, window_bounds = array<i64: 1, 128>}, {transform_indices = @transform_5, window_bounds = array<i64: 8, 128>}]} {
    %c0 = arith.constant 0 : index
    %c0_0 = arith.constant 0 : index
    %0 = vector.load %arg1[%c0, %c0_0] : memref<8x256xf32, #tpu.memory_space<vmem>>, vector<8x256xf32>
    %1 = arith.truncf %0 : vector<8x256xf32> to vector<8x256xbf16>
    %c0_1 = arith.constant 0 : index
    %c0_2 = arith.constant 0 : index
    %2 = vector.load %arg2[%c0_1, %c0_2] : memref<256x128xbf16, #tpu.memory_space<vmem>>, vector<256x128xbf16>
    %cst = arith.constant dense<0.000000e+00> : vector<8x128xf32>
    %3 = tpu.matmul %1, %2, %cst {dimension_numbers = #tpu.dot_dimension_numbers<[1], [0], [0], [1], [0, 0, 1, 1], [], []>} : vector<8x256xbf16>, vector<256x128xbf16>, vector<8x128xf32> -> vector<8x128xf32>
    %c0_3 = arith.constant 0 : index
    %c0_4 = arith.constant 0 : index
    %4 = vector.load %arg3[%c0_3, %c0_4] : memref<1x128xf32, #tpu.memory_space<vmem>>, vector<1x128xf32>
    %5 = vector.broadcast %4 : vector<1x128xf32> to vector<8x128xf32>
    %6 = arith.addf %3, %5 : vector<8x128xf32>
    %cst_5 = arith.constant 0.000000e+00 : f32
    %7 = vector.broadcast %cst_5 : f32 to vector<8x128xf32>
    %8 = arith.maximumf %6, %7 : vector<8x128xf32>
    %9 = arith.truncf %8 : vector<8x128xf32> to vector<8x128xbf16>
    %c0_6 = arith.constant 0 : index
    %c0_7 = arith.constant 0 : index
    %10 = vector.load %arg4[%c0_6, %c0_7] : memref<128x128xbf16, #tpu.memory_space<vmem>>, vector<128x128xbf16>
    %cst_8 = arith.constant dense<0.000000e+00> : vector<8x128xf32>
    %11 = tpu.matmul %9, %10, %cst_8 {dimension_numbers = #tpu.dot_dimension_numbers<[1], [0], [0], [1], [0, 0, 1, 1], [], []>} : vector<8x128xbf16>, vector<128x128xbf16>, vector<8x128xf32> -> vector<8x128xf32>
    %c0_9 = arith.constant 0 : index
    %c0_10 = arith.constant 0 : index
    %12 = vector.load %arg5[%c0_9, %c0_10] : memref<1x128xf32, #tpu.memory_space<vmem>>, vector<1x128xf32>
    %13 = vector.broadcast %12 : vector<1x128xf32> to vector<8x128xf32>
    %14 = arith.addf %11, %13 : vector<8x128xf32>
    %cst_11 = arith.constant dense<0xFF800000> : vector<8xf32>
    %15 = vector.multi_reduction <maximumf>, %14, %cst_11 [1] : vector<8x128xf32> to vector<8xf32>
    %16 = vector.shape_cast %15 : vector<8xf32> to vector<8x1xf32>
    %17 = vector.broadcast %16 : vector<8x1xf32> to vector<8x128xf32>
    %18 = arith.subf %14, %17 : vector<8x128xf32>
    %19 = math.exp %18 : vector<8x128xf32>
    %cst_12 = arith.constant dense<0.000000e+00> : vector<8xf32>
    %20 = vector.multi_reduction <add>, %19, %cst_12 [1] : vector<8x128xf32> to vector<8xf32>
    %21 = vector.shape_cast %20 : vector<8xf32> to vector<8x1xf32>
    %22 = math.log %21 : vector<8x1xf32>
    %23 = vector.broadcast %22 : vector<8x1xf32> to vector<8x128xf32>
    %24 = arith.subf %18, %23 : vector<8x128xf32>
    %c0_13 = arith.constant 0 : index
    %c0_14 = arith.constant 0 : index
    %25 = vector.load %arg6[%c0_13, %c0_14] : memref<8x128xf32, #tpu.memory_space<vmem>>, vector<8x128xf32>
    tpu.vector_store %arg6[%c0_13, %c0_14], %24 {strides = array<i32>} : memref<8x128xf32, #tpu.memory_space<vmem>>, vector<8x128xf32>,
    return
  }
  func.func @transform_0(%arg0: i32) -> (i32, i32) {
    %c0_i32 = arith.constant 0 : i32
    %c0_i32_0 = arith.constant 0 : i32
    return %arg0, %c0_i32 : i32, i32
  }
  func.func @transform_1(%arg0: i32) -> (i32, i32) {
    %c0_i32 = arith.constant 0 : i32
    %c0_i32_0 = arith.constant 0 : i32
    %c0_i32_1 = arith.constant 0 : i32
    return %c0_i32, %c0_i32_0 : i32, i32
  }
  func.func @transform_2(%arg0: i32) -> (i32, i32) {
    %c0_i32 = arith.constant 0 : i32
    %c0_i32_0 = arith.constant 0 : i32
    %c0_i32_1 = arith.constant 0 : i32
    return %c0_i32, %c0_i32_0 : i32, i32
  }
  func.func @transform_3(%arg0: i32) -> (i32, i32) {
    %c0_i32 = arith.constant 0 : i32
    %c0_i32_0 = arith.constant 0 : i32
    %c0_i32_1 = arith.constant 0 : i32
    return %c0_i32, %c0_i32_0 : i32, i32
  }
  func.func @transform_4(%arg0: i32) -> (i32, i32) {
    %c0_i32 = arith.constant 0 : i32
    %c0_i32_0 = arith.constant 0 : i32
    %c0_i32_1 = arith.constant 0 : i32
    return %c0_i32, %c0_i32_0 : i32, i32
  }
  func.func @transform_5(%arg0: i32) -> (i32, i32) {
    %c0_i32 = arith.constant 0 : i32
    %c0_i32_0 = arith.constant 0 : i32
    return %arg0, %c0_i32 : i32, i32
  }
}

</mosaic_0001>

<llo_original>
// kernel: _net_forward_impl.1
$region0: #{_net_forward_impl.1}
  #allocation0 [shape = 'u32[]', space=smem, size = 0x4, offset = 0x4, fixed_abs, tag = 'smem constant byte address 0x4 - core index']
  #allocation1 [shape = 'u32[144,128]{1,0:T(1,128)}', space=vmem, size = 0x12000, scoped, tag = 'internal scratch']
  %s0 = inlined_call_operand.vmem [shape: f32[8,256], index: 0, kind: input, shape index: {}]
  %s1 = inlined_call_operand.vmem [shape: bf16[256,128], index: 1, kind: input, shape index: {}]
  %s2 = inlined_call_operand.vmem [shape: f32[1,128], index: 2, kind: input, shape index: {}]
  %s3 = inlined_call_operand.hbm [shape: bf16[128,128], index: 3, kind: input, shape index: {}]
  %s4 = inlined_call_operand.vmem [shape: f32[1,128], index: 4, kind: input, shape index: {}]
  %s5 = inlined_call_operand.hbm [shape: f32[8,128], index: 5, kind: output, shape index: {}]
  %s6 = sld [smem:[#allocation0]]
  $region34: #{_net_forward_impl.1} parent=0
    _
  %s8 = ssub.s32 1, %s6
  %s9 = scalar_select 0, %s8, %s6
  $region1: #{_net_forward_impl.1} parent=0
    #allocation2 [shape = 'u8[32768]{0}', space=vmem, size = 0x8000, scoped, tag = 'input window, operand 3, single buffered']
    #allocation3 [shape = 's32[1]{0}', space=sflag, size = 0x4, scoped, tag = 'scoped memory for _net_forward_impl.1']
    #allocation4 [shape = 's32[1]{0}', space=sflag, size = 0x4, scoped, tag = 'scoped memory for _net_forward_impl.1']
    #allocation5 [shape = 'u8[4096]{0}', space=vmem, size = 0x1000, scoped, tag = 'output window, operand 0, single buffered']
    %10 = vsyncpa [#allocation3], 0
    %11 = vsyncpa [#allocation4], 0
    // Predicated region
    $region2: #{_net_forward_impl.1} parent=1 // pred_check
      _
    $region3: #{_net_forward_impl.1} parent=1 // pred_check_branch
      %13 = sbr.rel (0) target = $region5
    $region4: #{_net_forward_impl.1} parent=1 // pred_region
      _
    $region5: #{_net_forward_impl.1} parent=1 // pred_fallthru
      _
    // Predicated region
    $region6: #{_net_forward_impl.1} parent=1 // pred_check
      _
    $region7: #{_net_forward_impl.1} parent=1 // pred_check_branch
      %15 = sbr.rel (0) target = $region9
    $region8: #{_net_forward_impl.1} parent=1 // pred_region
      _
    $region9: #{_net_forward_impl.1} parent=1 // pred_fallthru
      _
    // Predicated region
    $region10: #{_net_forward_impl.1} parent=1 // pred_check
      _
    $region11: #{_net_forward_impl.1} parent=1 // pred_check_branch
      %17 = sbr.rel (0) target = $region13
    $region12: #{_net_forward_impl.1} parent=1 // pred_region
      _
    $region13: #{_net_forward_impl.1} parent=1 // pred_fallthru
      _
    // Predicated region
    $region14: #{_net_forward_impl.1} parent=1 // pred_check
      _
    $region15: #{_net_forward_impl.1} parent=1 // pred_check_branch
      %19 = sbr.rel (0) target = $region17
    $region16: #{_net_forward_impl.1} parent=1 // pred_region
      %s21 = ssub.s32 1024, 1024
      %22 = vsyncadd [#allocation3], %s21
      %s23 = sshll.u32 [#allocation2], 4
      %s24 = int_to_ptr.vmem [resolvable:$true] %s23
      %29 = dma.hbm_to_vmem [thread:$0]  %s3, 1024, %s24, [#allocation3], 64, 64, 4
    $region17: #{_net_forward_impl.1} parent=1 // pred_fallthru
      _
    // Predicated region
    $region18: #{_net_forward_impl.1} parent=1 // pred_check
      _
    $region19: #{_net_forward_impl.1} parent=1 // pred_check_branch
      %31 = sbr.rel (0) target = $region21
    $region20: #{_net_forward_impl.1} parent=1 // pred_region
      _
    $region21: #{_net_forward_impl.1} parent=1 // pred_fallthru
      _
    // Predicated region
    $region22: #{_net_forward_impl.1} parent=1 // pred_check
      _
    $region23: #{_net_forward_impl.1} parent=1 // pred_check_branch
      %33 = sbr.rel (0) target = $region25
    $region24: #{_net_forward_impl.1} parent=1 // pred_region
      %34 = dma.done [#allocation3], 1024
    $region25: #{_net_forward_impl.1} parent=1 // pred_fallthru
      _
    %v36 = vld [vmem:[%s0] sm:$0xff]
    %v37 = vld [vmem:[%s0 + $0x8] sm:$0xff]
    %v38 = vpack.c.bf16 %v36, %v36
    %v39 = vpack.c.bf16 %v37, %v37
    %v40 = vld [vmem:[%s1] sm:$0xf]
    %v41 = vld [vmem:[%s1 + $0x4] sm:$0xf]
    %v42 = vld [vmem:[%s1 + $0x8] sm:$0xf]
    %v43 = vld [vmem:[%s1 + $0xc] sm:$0xf]
    %v44 = vld [vmem:[%s1 + $0x10] sm:$0xf]
    %v45 = vld [vmem:[%s1 + $0x14] sm:$0xf]
    %v46 = vld [vmem:[%s1 + $0x18] sm:$0xf]
    %v47 = vld [vmem:[%s1 + $0x1c] sm:$0xf]
    %v48 = vld [vmem:[%s1 + $0x20] sm:$0xf]
    %v49 = vld [vmem:[%s1 + $0x24] sm:$0xf]
    %v50 = vld [vmem:[%s1 + $0x28] sm:$0xf]
    %v51 = vld [vmem:[%s1 + $0x2c] sm:$0xf]
    %v52 = vld [vmem:[%s1 + $0x30] sm:$0xf]
    %v53 = vld [vmem:[%s1 + $0x34] sm:$0xf]
    %v54 = vld [vmem:[%s1 + $0x38] sm:$0xf]
    %v55 = vld [vmem:[%s1 + $0x3c] sm:$0xf]
    %v56 = vld [vmem:[%s1 + $0x40] sm:$0xf]
    %v57 = vld [vmem:[%s1 + $0x44] sm:$0xf]
    %v58 = vld [vmem:[%s1 + $0x48] sm:$0xf]
    %v59 = vld [vmem:[%s1 + $0x4c] sm:$0xf]
    %v60 = vld [vmem:[%s1 + $0x50] sm:$0xf]
    %v61 = vld [vmem:[%s1 + $0x54] sm:$0xf]
    %v62 = vld [vmem:[%s1 + $0x58] sm:$0xf]
    %v63 = vld [vmem:[%s1 + $0x5c] sm:$0xf]
    %v64 = vld [vmem:[%s1 + $0x60] sm:$0xf]
    %v65 = vld [vmem:[%s1 + $0x64] sm:$0xf]
    %v66 = vld [vmem:[%s1 + $0x68] sm:$0xf]
    %v67 = vld [vmem:[%s1 + $0x6c] sm:$0xf]
    %v68 = vld [vmem:[%s1 + $0x70] sm:$0xf]
    %v69 = vld [vmem:[%s1 + $0x74] sm:$0xf]
    %v70 = vld [vmem:[%s1 + $0x78] sm:$0xf]
    %v71 = vld [vmem:[%s1 + $0x7c] sm:$0xf]
    %v72 = vld [vmem:[%s2] sm:$0x1]
    %v74 = vlaneseq
    %v75 = vshrl.u32 %v74, 7
    %v76 = vsub.s32 0, %v75
    %v77 = vrot.slane %v72, %v76
    %v111 = vunpack.c.l.b16 %v40
    %v112 = vunpack.c.l.b16 %v41
    %v113 = vunpack.c.l.b16 %v42
    %v114 = vunpack.c.l.b16 %v43
    %v115 = vunpack.c.l.b16 %v44
    %v116 = vunpack.c.l.b16 %v45
    %v117 = vunpack.c.l.b16 %v46
    %v118 = vunpack.c.l.b16 %v47
    %v119 = vunpack.c.l.b16 %v48
    %v120 = vunpack.c.l.b16 %v49
    %v121 = vunpack.c.l.b16 %v50
    %v122 = vunpack.c.l.b16 %v51
    %v123 = vunpack.c.l.b16 %v52
    %v124 = vunpack.c.l.b16 %v53
    %v125 = vunpack.c.l.b16 %v54
    %v126 = vunpack.c.l.b16 %v55
    %v127 = vunpack.c.l.b16 %v56
    %v128 = vunpack.c.l.b16 %v57
    %v129 = vunpack.c.l.b16 %v58
    %v130 = vunpack.c.l.b16 %v59
    %v131 = vunpack.c.l.b16 %v60
    %v132 = vunpack.c.l.b16 %v61
    %v133 = vunpack.c.l.b16 %v62
    %v134 = vunpack.c.l.b16 %v63
    %v135 = vunpack.c.l.b16 %v64
    %v136 = vunpack.c.l.b16 %v65
    %v137 = vunpack.c.l.b16 %v66
    %v138 = vunpack.c.l.b16 %v67
    %v139 = vunpack.c.l.b16 %v68
    %v140 = vunpack.c.l.b16 %v69
    %v141 = vunpack.c.l.b16 %v70
    %v142 = vunpack.c.l.b16 %v71
    %v143 = vpack.c.b16 %v112, %v111
    %v144 = vpack.c.b16 %v114, %v113
    %v145 = vpack.c.b16 %v116, %v115
    %v146 = vpack.c.b16 %v118, %v117
    %v147 = vpack.c.b16 %v120, %v119
    %v148 = vpack.c.b16 %v122, %v121
    %v149 = vpack.c.b16 %v124, %v123
    %v150 = vpack.c.b16 %v126, %v125
    %v151 = vpack.c.b16 %v128, %v127
    %v152 = vpack.c.b16 %v130, %v129
    %v153 = vpack.c.b16 %v132, %v131
    %v154 = vpack.c.b16 %v134, %v133
    %v155 = vpack.c.b16 %v136, %v135
    %v156 = vpack.c.b16 %v138, %v137
    %v157 = vpack.c.b16 %v140, %v139
    %v158 = vpack.c.b16 %v142, %v141
    %175 = vmatprep.subr.bf16.mxu0 0
    %176 = vmatpush1.bf16.msra.mxu0 %v143
    %177 = vmatprep.subr.bf16.mxu0 0
    %178 = vmatpush1.bf16.msra.mxu0 %v144
    %179 = vmatprep.subr.bf16.mxu0 0
    %180 = vmatpush1.bf16.msra.mxu0 %v145
    %181 = vmatprep.subr.bf16.mxu0 0
    %182 = vmatpush1.bf16.msra.mxu0 %v146
    %183 = vmatprep.subr.bf16.mxu0 0
    %184 = vmatpush1.bf16.msra.mxu0 %v147
    %185 = vmatprep.subr.bf16.mxu0 0
    %186 = vmatpush1.bf16.msra.mxu0 %v148
    %187 = vmatprep.subr.bf16.mxu0 0
    %188 = vmatpush1.bf16.msra.mxu0 %v149
    %189 = vmatprep.subr.bf16.mxu0 0
    %190 = vmatpush1.bf16.msra.mxu0 %v150
    %191 = vmatprep.subr.bf16.mxu0 0
    %192 = vmatpush1.bf16.msra.mxu0 %v151
    %193 = vmatprep.subr.bf16.mxu0 0
    %194 = vmatpush1.bf16.msra.mxu0 %v152
    %195 = vmatprep.subr.bf16.mxu0 0
    %196 = vmatpush1.bf16.msra.mxu0 %v153
    %197 = vmatprep.subr.bf16.mxu0 0
    %198 = vmatpush1.bf16.msra.mxu0 %v154
    %199 = vmatprep.subr.bf16.mxu0 0
    %200 = vmatpush1.bf16.msra.mxu0 %v155
    %201 = vmatprep.subr.bf16.mxu0 0
    %202 = vmatpush1.bf16.msra.mxu0 %v156
    %203 = vmatprep.subr.bf16.mxu0 0
    %204 = vmatpush1.bf16.msra.mxu0 %v157
    %205 = vmatprep.subr.bf16.mxu0 0
    %206 = vmatpush1.bf16.msra.mxu0 %v158
    %207 = vmatprep.mubr.bf16.mxu0 %v39
    %208 = vmatmul.mubr.bf16.gmra.mrb[0].mxu0 %v38
    %v209 = vpop.f32.mrb[0].mxu0
    %v210 = vadd.f32 %v77, %v209
    %v211 = vpop.f32.mrb[0].mxu0
    %v212 = vpop.f32.mrb[0].mxu0
    %v213 = vpop.f32.mrb[0].mxu0
    %214 = vdwg.mxu0
    %v215 = vmax.f32 %v210, 0.0
    %v216 = vpack.c.bf16 %v215, %v215
    %v217 = vld [vmem:[#allocation2] sm:$0xf]
    %v218 = vld [vmem:[#allocation2 + $0x4] sm:$0xf]
    %v219 = vld [vmem:[#allocation2 + $0x8] sm:$0xf]
    %v220 = vld [vmem:[#allocation2 + $0xc] sm:$0xf]
    %v221 = vld [vmem:[#allocation2 + $0x10] sm:$0xf]
    %v222 = vld [vmem:[#allocation2 + $0x14] sm:$0xf]
    %v223 = vld [vmem:[#allocation2 + $0x18] sm:$0xf]
    %v224 = vld [vmem:[#allocation2 + $0x1c] sm:$0xf]
    %v225 = vld [vmem:[#allocation2 + $0x20] sm:$0xf]
    %v226 = vld [vmem:[#allocation2 + $0x24] sm:$0xf]
    %v227 = vld [vmem:[#allocation2 + $0x28] sm:$0xf]
    %v228 = vld [vmem:[#allocation2 + $0x2c] sm:$0xf]
    %v229 = vld [vmem:[#allocation2 + $0x30] sm:$0xf]
    %v230 = vld [vmem:[#allocation2 + $0x34] sm:$0xf]
    %v231 = vld [vmem:[#allocation2 + $0x38] sm:$0xf]
    %v232 = vld [vmem:[#allocation2 + $0x3c] sm:$0xf]
    %v233 = vld [vmem:[%s4] sm:$0x1]
    %v235 = vlaneseq
    %v236 = vshrl.u32 %v235, 7
    %v237 = vsub.s32 0, %v236
    %v238 = vrot.slane %v233, %v237
    %v256 = vunpack.c.l.b16 %v217
    %v257 = vunpack.c.l.b16 %v218
    %v258 = vunpack.c.l.b16 %v219
    %v259 = vunpack.c.l.b16 %v220
    %v260 = vunpack.c.l.b16 %v221
    %v261 = vunpack.c.l.b16 %v222
    %v262 = vunpack.c.l.b16 %v223
    %v263 = vunpack.c.l.b16 %v224
    %v264 = vunpack.c.l.b16 %v225
    %v265 = vunpack.c.l.b16 %v226
    %v266 = vunpack.c.l.b16 %v227
    %v267 = vunpack.c.l.b16 %v228
    %v268 = vunpack.c.l.b16 %v229
    %v269 = vunpack.c.l.b16 %v230
    %v270 = vunpack.c.l.b16 %v231
    %v271 = vunpack.c.l.b16 %v232
    %v272 = vpack.c.b16 %v257, %v256
    %v273 = vpack.c.b16 %v259, %v258
    %v274 = vpack.c.b16 %v261, %v260
    %v275 = vpack.c.b16 %v263, %v262
    %v276 = vpack.c.b16 %v265, %v264
    %v277 = vpack.c.b16 %v267, %v266
    %v278 = vpack.c.b16 %v269, %v268
    %v279 = vpack.c.b16 %v271, %v270
    %288 = vmatprep.subr.bf16.mxu0 0
    %289 = vmatpush1.bf16.msra.mxu0 %v272
    %290 = vmatprep.subr.bf16.mxu0 0
    %291 = vmatpush1.bf16.msra.mxu0 %v273
    %292 = vmatprep.subr.bf16.mxu0 0
    %293 = vmatpush1.bf16.msra.mxu0 %v274
    %294 = vmatprep.subr.bf16.mxu0 0
    %295 = vmatpush1.bf16.msra.mxu0 %v275
    %296 = vmatprep.subr.bf16.mxu0 0
    %297 = vmatpush1.bf16.msra.mxu0 %v276
    %298 = vmatprep.subr.bf16.mxu0 0
    %299 = vmatpush1.bf16.msra.mxu0 %v277
    %300 = vmatprep.subr.bf16.mxu0 0
    %301 = vmatpush1.bf16.msra.mxu0 %v278
    %302 = vmatprep.subr.bf16.mxu0 0
    %303 = vmatpush1.bf16.msra.mxu0 %v279
    %304 = vmatprep.subr.bf16.mxu0 0
    %305 = vmatpush1.bf16.msra.mxu0 0
    %306 = vmatprep.subr.bf16.mxu0 0
    %307 = vmatpush1.bf16.msra.mxu0 0
    %308 = vmatprep.subr.bf16.mxu0 0
    %309 = vmatpush1.bf16.msra.mxu0 0
    %310 = vmatprep.subr.bf16.mxu0 0
    %311 = vmatpush1.bf16.msra.mxu0 0
    %312 = vmatprep.subr.bf16.mxu0 0
    %313 = vmatpush1.bf16.msra.mxu0 0
    %314 = vmatprep.subr.bf16.mxu0 0
    %315 = vmatpush1.bf16.msra.mxu0 0
    %316 = vmatprep.subr.bf16.mxu0 0
    %317 = vmatpush1.bf16.msra.mxu0 0
    %318 = vmatprep.subr.bf16.mxu0 0
    %319 = vmatpush1.bf16.msra.mxu0 0
    %320 = vmatprep.mubr.bf16.mxu0 0
    %321 = vmatmul.mubr.bf16.gmra.mrb[0].mxu0 %v216
    %v322 = vpop.f32.mrb[0].mxu0
    %v323 = vadd.f32 %v238, %v322
    %v324 = vpop.f32.mrb[0].mxu0
    %v325 = vpop.f32.mrb[0].mxu0
    %v326 = vpop.f32.mrb[0].mxu0
    %327 = vdwg.mxu0
    %328 = vmax.xlane.f32.xlu0 %v323
    %v329 = vpop.xlane.xlu0 %328
    %v330 = vsub.f32 %v323, %v329
    %v331 = vmul.f32 %v330, 1.442695
    %v332 = vpow.pop %v331
    %333 = vadd.xlane.f32.xlu0 %v332
    %v334 = vpop.xlane.xlu0 %333
    %v335 = vlog2.pop %v334
    %v336 = vmul.f32 %v335, 0.6931472
    %v337 = vsub.f32 %v330, %v336
    %338 = vst [vmem:[#allocation5] sm:$0xff] %v337
    // Predicated region
    $region26: #{_net_forward_impl.1} parent=1 // pred_check
      _
    $region27: #{_net_forward_impl.1} parent=1 // pred_check_branch
      %340 = sbr.rel (0) target = $region29
    $region28: #{_net_forward_impl.1} parent=1 // pred_region
      %s342 = ssub.s32 128, 128
      %343 = vsyncadd [#allocation4], %s342
      %s345 = sshll.u32 [#allocation5], 4
      %s346 = int_to_ptr.vmem [resolvable:$true] %s345
      %348 = dma.vmem_to_hbm [thread:$0]  %s346, 128, %s5, [#allocation4]
    $region29: #{_net_forward_impl.1} parent=1 // pred_fallthru
      _
    // Predicated region
    $region30: #{_net_forward_impl.1} parent=1 // pred_check
      _
    $region31: #{_net_forward_impl.1} parent=1 // pred_check_branch
      %350 = sbr.rel (0) target = $region33
    $region32: #{_net_forward_impl.1} parent=1 // pred_region
      %351 = dma.done [#allocation4], 128
    $region33: #{_net_forward_impl.1} parent=1 // pred_fallthru
      _
    %352 = vsyncpa [#allocation3], 1
    %353 = vsyncpa [#allocation4], 1

</llo_original>
